<compile_context>
chip_gen: v7x
topology: tpu7x:2x2x1
jax: 0.10.0
libtpu: 0.0.40
codegen_flags: <defaults>
</compile_context>

<pallas_src>
import jax
import jax.numpy as jnp
from jax.experimental import pallas as pl
from jax.experimental.pallas import tpu as pltpu


def _mean_pool_kernel(x_ref, m_ref, o_ref, acc_ref, msum_ref):
    # x_ref:    (1, St, Ht)  hidden-state tile, native dtype
    # m_ref:    (1, 1,  St)  float32 mask tile (lane-dense)
    # o_ref:    (1, 1,  Ht)  pooled output tile
    # acc_ref:  (1, Ht) f32  embedding-sum accumulator (VMEM scratch)
    # msum_ref: (1, 1)  f32  mask-count accumulator    (VMEM scratch)
    s = pl.program_id(2)

    @pl.when(s == 0)
    def _init():
        acc_ref[...] = jnp.zeros_like(acc_ref)
        msum_ref[...] = jnp.zeros_like(msum_ref)

    x = x_ref[0]                                   # (St, Ht), native dtype
    m = m_ref[0]                                   # (1, St), float32
    # Fused mask-multiply + sequence reduction on the (otherwise idle) MXU,
    # accumulating in float32.  Mask values are exactly 0/1 so the cast to the
    # input dtype is lossless.
    acc_ref[...] += jnp.dot(m.astype(x.dtype), x,
                            preferred_element_type=jnp.float32)
    msum_ref[...] += jnp.sum(m, keepdims=True)     # (1, 1)

    @pl.when(s == pl.num_programs(2) - 1)
    def _finalize():
        denom = jnp.maximum(msum_ref[...], 1e-9)   # torch.clamp(min=1e-9)
        # NOTE: pl.reciprocal(denom, approx=True) would move this onto the EUP,
        # but the finalize runs once per output tile so a plain divide is free.
        o_ref[0] = (acc_ref[...] / denom).astype(o_ref.dtype)


def _pick_tile(dim, candidates):
    """Largest candidate that divides `dim`, else the full extent (always legal)."""
    for c in candidates:
        if dim % c == 0:
            return c
    return dim


def masked_mean_pool(last_hidden_state, attention_mask, out_dtype=jnp.float32):
    """last_hidden_state: [B, S, H]; attention_mask: [B, S] (any numeric dtype).

    Returns [B, H] in `out_dtype` (float32 by default, matching the PyTorch
    module where the `.float()` mask promotes the result to float32).
    """
    B, S, H = last_hidden_state.shape
    mask_f = attention_mask.astype(jnp.float32).reshape(B, 1, S)  # lane-dense

    # H tiles: multiple of 128 (lane dim) or full H.  S tiles: multiple of 128
    # so mask blocks stay lane-aligned, or full S.  Max input tile is
    # 512*1024*4 B = 2 MiB -> 4 MiB double-buffered: well inside the default
    # scoped VMEM on v5e/v6e and v7x's 64 MiB physical VMEM.
    h_t = _pick_tile(H, (1024, 512, 256, 128))
    s_t = _pick_tile(S, (512, 256, 128))

    grid = (B, H // h_t, S // s_t)

    out = pl.pallas_call(
        _mean_pool_kernel,
        out_shape=jax.ShapeDtypeStruct((B, 1, H), out_dtype),
        grid_spec=pltpu.PrefetchScalarGridSpec(
            num_scalar_prefetch=0,
            grid=grid,
            in_specs=[
                pl.BlockSpec((1, s_t, h_t), lambda b, h, s: (b, s, h)),
                pl.BlockSpec((1, 1, s_t), lambda b, h, s: (b, 0, s)),
            ],
            out_specs=pl.BlockSpec((1, 1, h_t), lambda b, h, s: (b, 0, h)),
            scratch_shapes=[
                pltpu.VMEM((1, h_t), jnp.float32),
                pltpu.VMEM((1, 1), jnp.float32),
            ],
        ),
        compiler_params=pltpu.CompilerParams(
            dimension_semantics=("parallel", "parallel", "arbitrary"),
        ),
    )(last_hidden_state, mask_f)
    return out.reshape(B, H)


def mean_pooling_forward(hidden_states, attention_mask, n_last_layers=None,
                         out_dtype=jnp.float32):
    """JAX/Pallas equivalent of MeanPooling.forward.

    hidden_states: a single [B, S, H] array when n_last_layers is None
    (outputs.last_hidden_state), otherwise a list/tuple of per-layer
    [B, S, H] arrays (outputs.hidden_states).
    """
    if n_last_layers is None:
        return masked_mean_pool(hidden_states, attention_mask, out_dtype)
    layers = list(hidden_states)[-n_last_layers:]
    # Mean pooling commutes with concat along H: pool each layer separately and
    # concatenate the tiny [B, H] results instead of materializing [B, S, H*n].
    pooled = [masked_mean_pool(h, attention_mask, out_dtype) for h in layers]
    return jnp.concatenate(pooled, axis=-1)


def _reference(last_hidden_state, attention_mask):
    m = attention_mask.astype(jnp.float32)[:, :, None]
    sum_emb = jnp.sum(last_hidden_state.astype(jnp.float32) * m, axis=1)
    sum_mask = jnp.maximum(jnp.sum(m, axis=1), 1e-9)
    return sum_emb / sum_mask


if __name__ == "__main__":
    key = jax.random.PRNGKey(0)
    B, S, H = 2, 384, 128          # small but tile-aligned (St=128 -> 3 S-steps)
    n_layers = 3

    k_hs, _ = jax.random.split(key)

    def make_layer(i, dtype):
        v = jax.random.normal(jax.random.fold_in(k_hs, i), (B, S, H), jnp.float32)
        # Snap values to bf16-representable numbers so the MXU reduction is
        # bit-exact regardless of the hardware matmul pass scheme.
        return v.astype(jnp.bfloat16).astype(dtype)

    # Attention mask: row 0 fully attended, row 1 has 100 valid tokens.
    attention_mask = (jnp.arange(S)[None, :]
                      < jnp.array([[S], [100]])).astype(jnp.int32)

    # Case 1: n_last_layers = None -> pool last_hidden_state (float32 input).
    last_hidden_state = make_layer(n_layers - 1, jnp.float32)
    out_none = jax.block_until_ready(
        mean_pooling_forward(last_hidden_state, attention_mask, None))
    ref_none = _reference(last_hidden_state, attention_mask)
    assert out_none.shape == (B, H)
    assert jnp.allclose(out_none, ref_none, atol=1e-4, rtol=1e-4)

    # Case 2: n_last_layers = 2 -> concat of the last two (bf16) layers.
    hidden_states = [make_layer(i, jnp.bfloat16) for i in range(n_layers)]
    n_last = 2
    out_cat = jax.block_until_ready(
        mean_pooling_forward(hidden_states, attention_mask, n_last))
    ref_cat = _reference(
        jnp.concatenate([h.astype(jnp.float32) for h in hidden_states[-n_last:]],
                        axis=-1),
        attention_mask)
    assert out_cat.shape == (B, H * n_last)
    assert jnp.allclose(out_cat, ref_cat, atol=1e-4, rtol=1e-4)

    print("KERNEL_OK")
</pallas_src>

<mosaic_0001>
module attributes {stable_mosaic.version = 11 : i64} {
  func.func @_mean_pool_kernel(%arg0: i32, %arg1: i32, %arg2: i32, %arg3: memref<1x128x128xf32, #tpu.memory_space<vmem>>, %arg4: memref<1x1x128xf32, #tpu.memory_space<vmem>>, %arg5: memref<1x1x128xf32, #tpu.memory_space<vmem>>, %arg6: memref<1x128xf32, #tpu.memory_space<vmem>>, %arg7: memref<1x1xf32, #tpu.memory_space<vmem>>) attributes {dimension_semantics = [#tpu.dimension_semantics<parallel>, #tpu.dimension_semantics<parallel>, #tpu.dimension_semantics<arbitrary>], iteration_bounds = array<i64: 2, 1, 3>, scalar_prefetch = 0 : i64, scratch_operands = 2 : i64, tpu.core_type = #tpu.core_type<tc>, window_params = [{transform_indices = @transform_0, window_bounds = array<i64: 1, 128, 128>}, {transform_indices = @transform_1, window_bounds = array<i64: 1, 1, 128>}, {transform_indices = @transform_2, window_bounds = array<i64: 1, 1, 128>}]} {
    %c0_i32 = arith.constant 0 : i32
    %0 = arith.cmpi eq, %arg2, %c0_i32 : i32
    %1 = arith.extui %0 : i1 to i32
    %c0_i32_0 = arith.constant 0 : i32
    %2 = arith.cmpi ne, %1, %c0_i32_0 : i32
    scf.if %2 {
      %cst_16 = arith.constant 0.000000e+00 : f32
      %22 = vector.broadcast %cst_16 : f32 to vector<1x128xf32>
      %c0_17 = arith.constant 0 : index
      %c0_18 = arith.constant 0 : index
      %23 = vector.load %arg6[%c0_17, %c0_18] : memref<1x128xf32, #tpu.memory_space<vmem>>, vector<1x128xf32>
      tpu.vector_store %arg6[%c0_17, %c0_18], %22 {strides = array<i32>} : memref<1x128xf32, #tpu.memory_space<vmem>>, vector<1x128xf32>,
      %cst_19 = arith.constant 0.000000e+00 : f32
      %24 = vector.broadcast %cst_19 : f32 to vector<1x1xf32>
      %c0_20 = arith.constant 0 : index
      %c0_21 = arith.constant 0 : index
      %25 = vector.load %arg7[%c0_20, %c0_21] : memref<1x1xf32, #tpu.memory_space<vmem>>, vector<1x1xf32>
      tpu.vector_store %arg7[%c0_20, %c0_21], %24 {strides = array<i32>} : memref<1x1xf32, #tpu.memory_space<vmem>>, vector<1x1xf32>,
    } else {
    }
    %c0 = arith.constant 0 : index
    %c0_1 = arith.constant 0 : index
    %c0_2 = arith.constant 0 : index
    %3 = vector.load %arg3[%c0, %c0_1, %c0_2] : memref<1x128x128xf32, #tpu.memory_space<vmem>>, vector<1x128x128xf32>
    %4 = vector.shape_cast %3 : vector<1x128x128xf32> to vector<128x128xf32>
    %c0_3 = arith.constant 0 : index
    %c0_4 = arith.constant 0 : index
    %c0_5 = arith.constant 0 : index
    %5 = vector.load %arg4[%c0_3, %c0_4, %c0_5] : memref<1x1x128xf32, #tpu.memory_space<vmem>>, vector<1x1x128xf32>
    %6 = vector.shape_cast %5 : vector<1x1x128xf32> to vector<1x128xf32>
    %c0_6 = arith.constant 0 : index
    %c0_7 = arith.constant 0 : index
    %7 = vector.load %arg6[%c0_6, %c0_7] : memref<1x128xf32, #tpu.memory_space<vmem>>, vector<1x128xf32>
    %cst = arith.constant dense<0.000000e+00> : vector<1x128xf32>
    %8 = tpu.matmul %6, %4, %cst {dimension_numbers = #tpu.dot_dimension_numbers<[1], [0], [0], [1], [0, 0, 1, 1], [], []>} : vector<1x128xf32>, vector<128x128xf32>, vector<1x128xf32> -> vector<1x128xf32>
    %9 = arith.addf %7, %8 : vector<1x128xf32>
    %c0_8 = arith.constant 0 : index
    %c0_9 = arith.constant 0 : index
    %10 = vector.load %arg6[%c0_8, %c0_9] : memref<1x128xf32, #tpu.memory_space<vmem>>, vector<1x128xf32>
    tpu.vector_store %arg6[%c0_8, %c0_9], %9 {strides = array<i32>} : memref<1x128xf32, #tpu.memory_space<vmem>>, vector<1x128xf32>,
    %c0_10 = arith.constant 0 : index
    %c0_11 = arith.constant 0 : index
    %11 = vector.load %arg7[%c0_10, %c0_11] : memref<1x1xf32, #tpu.memory_space<vmem>>, vector<1x1xf32>
    %12 = vector.shape_cast %6 : vector<1x128xf32> to vector<1x1x128xf32>
    %cst_12 = arith.constant dense<0.000000e+00> : vector<1xf32>
    %13 = vector.multi_reduction <add>, %12, %cst_12 [1, 2] : vector<1x1x128xf32> to vector<1xf32>
    %14 = vector.shape_cast %13 : vector<1xf32> to vector<1x1x1xf32>
    %15 = vector.extract %14[0, 0, 0] : f32 from vector<1x1x1xf32>
    %16 = vector.broadcast %15 : f32 to vector<1x1xf32>
    %17 = arith.addf %11, %16 : vector<1x1xf32>
    %c0_13 = arith.constant 0 : index
    %c0_14 = arith.constant 0 : index
    %18 = vector.load %arg7[%c0_13, %c0_14] : memref<1x1xf32, #tpu.memory_space<vmem>>, vector<1x1xf32>
    tpu.vector_store %arg7[%c0_13, %c0_14], %17 {strides = array<i32>} : memref<1x1xf32, #tpu.memory_space<vmem>>, vector<1x1xf32>,
    %c2_i32 = arith.constant 2 : i32
    %19 = arith.cmpi eq, %arg2, %c2_i32 : i32
    %20 = arith.extui %19 : i1 to i32
    %c0_i32_15 = arith.constant 0 : i32
    %21 = arith.cmpi ne, %20, %c0_i32_15 : i32
    scf.if %21 {
      %c0_16 = arith.constant 0 : index
      %c0_17 = arith.constant 0 : index
      %22 = vector.load %arg7[%c0_16, %c0_17] : memref<1x1xf32, #tpu.memory_space<vmem>>, vector<1x1xf32>
      %cst_18 = arith.constant 9.99999971E-10 : f32
      %23 = vector.broadcast %cst_18 : f32 to vector<1x1xf32>
      %24 = arith.maximumf %22, %23 : vector<1x1xf32>
      %c0_19 = arith.constant 0 : index
      %c0_20 = arith.constant 0 : index
      %25 = vector.load %arg6[%c0_19, %c0_20] : memref<1x128xf32, #tpu.memory_space<vmem>>, vector<1x128xf32>
      %26 = vector.broadcast %24 : vector<1x1xf32> to vector<1x128xf32>
      %27 = arith.divf %25, %26 : vector<1x128xf32>
      %c0_21 = arith.constant 0 : index
      %c0_22 = arith.constant 0 : index
      %c0_23 = arith.constant 0 : index
      %28 = vector.load %arg5[%c0_21, %c0_22, %c0_23] : memref<1x1x128xf32, #tpu.memory_space<vmem>>, vector<1x1x128xf32>
      %29 = vector.shape_cast %28 : vector<1x1x128xf32> to vector<1x128xf32>
      %30 = vector.shape_cast %27 : vector<1x128xf32> to vector<1x1x128xf32>
      tpu.vector_store %arg5[%c0_21, %c0_22, %c0_23], %30 {strides = array<i32>} : memref<1x1x128xf32, #tpu.memory_space<vmem>>, vector<1x1x128xf32>,
    } else {
    }
    return
  }
  func.func @transform_0(%arg0: i32, %arg1: i32, %arg2: i32) -> (i32, i32, i32) {
    %c0_i32 = arith.constant 0 : i32
    return %arg0, %arg2, %arg1 : i32, i32, i32
  }
  func.func @transform_1(%arg0: i32, %arg1: i32, %arg2: i32) -> (i32, i32, i32) {
    %c0_i32 = arith.constant 0 : i32
    %c0_i32_0 = arith.constant 0 : i32
    return %arg0, %c0_i32, %arg2 : i32, i32, i32
  }
  func.func @transform_2(%arg0: i32, %arg1: i32, %arg2: i32) -> (i32, i32, i32) {
    %c0_i32 = arith.constant 0 : i32
    %c0_i32_0 = arith.constant 0 : i32
    return %arg0, %c0_i32, %arg1 : i32, i32, i32
  }
}

</mosaic_0001>

<llo_original>
// kernel: tpu_custom_call.1
$region0: #{tpu_custom_call.1}
  #allocation0 [shape = 'u32[]', space=smem, size = 0x4, offset = 0x4, fixed_abs, tag = 'smem constant byte address 0x4 - core index']
  #allocation1 [shape = 'u32[144,128]{1,0:T(1,128)}', space=vmem, size = 0x12000, scoped, tag = 'internal scratch']
  #allocation2 [shape = 'f32[1,128]{1,0:T(1,128)}', space=vmem, size = 0x200, scoped, tag = 'scratch operand']
  #allocation3 [shape = 'f32[1,1]{1,0:T(1,128)}', space=vmem, size = 0x200, scoped, tag = 'scratch operand']
  %s0 = inlined_call_operand.hbm [shape: f32[2,384,128], index: 0, kind: input, shape index: {}]
  %s1 = inlined_call_operand.hbm [shape: f32[2,1,384], index: 1, kind: input, shape index: {}]
  %s2 = inlined_call_operand.hbm [shape: f32[2,1,128], index: 2, kind: output, shape index: {}]
  %s3 = sld [smem:[#allocation0]]
  $region57: #{tpu_custom_call.1} parent=0
    _
  %s5 = ssub.s32 1, %s3
  %s6 = scalar_select 0, %s5, %s3
  $region1: #{tpu_custom_call.1} parent=0
    #allocation4 [shape = 'u8[131072]{0}', space=vmem, size = 0x20000, scoped, tag = 'input window, operand 0']
    #allocation5 [shape = 's32[2]{0}', space=sflag, size = 0x8, scoped, tag = 'scoped memory for tpu_custom_call.1']
    #allocation6 [shape = 's32[2]{0}', space=sflag, size = 0x8, scoped, tag = 'scoped memory for tpu_custom_call.1']
    #allocation7 [shape = 'u8[1024]{0}', space=vmem, size = 0x400, scoped, tag = 'input window, operand 1']
    #allocation8 [shape = 's32[2]{0}', space=sflag, size = 0x8, scoped, tag = 'scoped memory for tpu_custom_call.1']
    #allocation9 [shape = 'u8[1024]{0}', space=vmem, size = 0x400, scoped, tag = 'output window, operand 0']
    %7 = vsyncpa [#allocation5], 0
    %s8 = scalar_lea.sflag [#allocation5], 1
    %9 = vsyncpa %s8, 0
    %10 = vsyncpa [#allocation8], 0
    %s11 = scalar_lea.sflag [#allocation8], 1
    %12 = vsyncpa %s11, 0
    %13 = vsyncpa [#allocation6], 0
    %s14 = scalar_lea.sflag [#allocation6], 1
    %15 = vsyncpa %s14, 0
    loop: start=0, step=1, limit=8
    $region2: #{tpu_custom_call.1} parent=1 // loop_pre_header
      _
    $region3: #{tpu_custom_call.1} parent=1 // loop_header
      %s17 = sphi 0, %s21
      %p18 = scmp.ge.s32.totalorder %s17, 8
      %s24 = sphi 0, %s43
      %s25 = sphi 0, %s39
      %s26 = sphi 0, %s35
      %s27 = sphi 0, %s24
      %s28 = sphi 0, %s25
      %s29 = sphi 0, %s26
      %s30 = sphi 0, %s27
      %s31 = sphi 0, %s28
      %s32 = sphi 0, %s29
      %s50 = sphi 0, %s52
      %s53 = sphi 0, %s50
      %s54 = sphi 0, %s53
      %s70 = sphi 0, %s54
      %s78 = sphi 0, %s80
      %s81 = sphi 0, %s78
      %s82 = sphi 0, %s81
      %s98 = sphi 0, %s82
      %s106 = sphi 0, %s108
      %s109 = sphi 0, %s106
      %s110 = sphi 0, %s109
      %s126 = sphi 0, %s110
    $region4: #{tpu_custom_call.1} parent=1 // loop_header_branch
      %20 = sbr.rel (%p18) target = $region8
    $region5: #{tpu_custom_call.1} parent=1 // loop_body
      %s22 = ssub.s32 %s17, 1
      %s23 = ssub.s32 %s17, 2
      %s33 = sadd.s32 1, %s26
      %p34 = scmp.ge.s32.totalorder %s33, 3
      %s35 = scalar_select %p34, 0, %s33
      %s36 = sadd.s32 1, %s25
      %s37 = scalar_select %p34, %s36, %s25
      %p38 = scmp.ge.s32.totalorder %s37, 1
      %s39 = scalar_select %p38, 0, %s37
      %s40 = sadd.s32 1, %s24
      %s41 = scalar_select %p38, %s40, %s24
      %p42 = scmp.ge.s32.totalorder %s41, 2
      %s43 = scalar_select %p42, 0, %s41
      %s44 = ssub.s32 %s24, %s43
      %s45 = ssub.s32 %s26, %s35
      %s46 = sor.u32 %s44, %s45
      %s47 = ssub.s32 %s25, %s39
      %s48 = sor.u32 %s46, %s47
      %p49 = scmp.eq.s32.totalorder %s48, 0
      %s51 = sadd.s32 %s50, 1
      %s52 = scalar_select %p49, %s50, %s51
      %p55 = pneg %p49
      %p56 = scmp.eq.s32.totalorder %s17, 5
      %p57 = por %p55, %p56
      %p58 = scmp.ne.s32.totalorder %s50, %s53
      %p59 = scmp.eq.s32.totalorder %s17, 0
      %p60 = por %p58, %p59
      %p61 = scmp.ne.s32.totalorder %s50, %s53
      %p62 = scmp.eq.s32.totalorder %s22, 5
      %p63 = por %p61, %p62
      %p64 = scmp.ne.s32.totalorder %s53, %s54
      %p65 = scmp.eq.s32.totalorder %s22, 0
      %p66 = por %p64, %p65
      %p67 = scmp.ne.s32.totalorder %s53, %s54
      %p68 = scmp.eq.s32.totalorder %s23, 5
      %p69 = por %p67, %p68
      %p71 = scmp.ne.s32.totalorder %s54, %s70
      %p72 = scmp.eq.s32.totalorder %s23, 0
      %p73 = por %p71, %p72
      %s74 = ssub.s32 %s24, %s43
      %s75 = ssub.s32 %s26, %s35
      %s76 = sor.u32 %s74, %s75
      %p77 = scmp.eq.s32.totalorder %s76, 0
      %s79 = sadd.s32 %s78, 1
      %s80 = scalar_select %p77, %s78, %s79
      %p83 = pneg %p77
      %p84 = scmp.eq.s32.totalorder %s17, 5
      %p85 = por %p83, %p84
      %p86 = scmp.ne.s32.totalorder %s78, %s81
      %p87 = scmp.eq.s32.totalorder %s17, 0
      %p88 = por %p86, %p87
      %p89 = scmp.ne.s32.totalorder %s78, %s81
      %p90 = scmp.eq.s32.totalorder %s22, 5
      %p91 = por %p89, %p90
      %p92 = scmp.ne.s32.totalorder %s81, %s82
      %p93 = scmp.eq.s32.totalorder %s22, 0
      %p94 = por %p92, %p93
      %p95 = scmp.ne.s32.totalorder %s81, %s82
      %p96 = scmp.eq.s32.totalorder %s23, 5
      %p97 = por %p95, %p96
      %p99 = scmp.ne.s32.totalorder %s82, %s98
      %p100 = scmp.eq.s32.totalorder %s23, 0
      %p101 = por %p99, %p100
      %s102 = ssub.s32 %s24, %s43
      %s103 = ssub.s32 %s25, %s39
      %s104 = sor.u32 %s102, %s103
      %p105 = scmp.eq.s32.totalorder %s104, 0
      %s107 = sadd.s32 %s106, 1
      %s108 = scalar_select %p105, %s106, %s107
      %p111 = pneg %p105
      %p112 = scmp.eq.s32.totalorder %s17, 5
      %p113 = por %p111, %p112
      %p114 = scmp.ne.s32.totalorder %s106, %s109
      %p115 = scmp.eq.s32.totalorder %s17, 0
      %p116 = por %p114, %p115
      %p117 = scmp.ne.s32.totalorder %s106, %s109
      %p118 = scmp.eq.s32.totalorder %s22, 5
      %p119 = por %p117, %p118
      %p120 = scmp.ne.s32.totalorder %s109, %s110
      %p121 = scmp.eq.s32.totalorder %s22, 0
      %p122 = por %p120, %p121
      %p123 = scmp.ne.s32.totalorder %s109, %s110
      %p124 = scmp.eq.s32.totalorder %s23, 5
      %p125 = por %p123, %p124
      %p127 = scmp.ne.s32.totalorder %s110, %s126
      %p128 = scmp.eq.s32.totalorder %s23, 0
      %p129 = por %p127, %p128
      %p130 = scmp.le.s32.totalorder 1, %s17
      %p131 = scmp.lt.s32.totalorder %s17, 7
      %p132 = pnand %p130, %p131
      %p133 = pneg %p132
      // Predicated region
      $region9: #{tpu_custom_call.1} parent=5 // pred_check
        _
      $region10: #{tpu_custom_call.1} parent=5 // pred_check_branch
        %135 = sbr.rel (%p132) target = $region12
      $region11: #{tpu_custom_call.1} parent=5 // pred_region
        %s136 = ssub.s32 %s17, 1
      $region12: #{tpu_custom_call.1} parent=5 // pred_fallthru
        _
      %p137 = scmp.lt.s32.totalorder %s17, 6
      // Predicated region
      $region13: #{tpu_custom_call.1} parent=5 // pred_check
        %p138 = pneg %p137
      $region14: #{tpu_custom_call.1} parent=5 // pred_check_branch
        %140 = sbr.rel (%p138) target = $region16
      $region15: #{tpu_custom_call.1} parent=5 // pred_region
        // Predicated region
        $region17: #{tpu_custom_call.1} parent=15 // pred_check
          %p141 = pneg %p60
        $region18: #{tpu_custom_call.1} parent=15 // pred_check_branch
          %143 = sbr.rel (%p141) target = $region20
        $region19: #{tpu_custom_call.1} parent=15 // pred_region
          %s144 = sand.u32 %s50, 1
          %s145 = scalar_lea.sflag [#allocation5], %s144
          %s146 = sand.u32 %s50, 1
          %s147 = smul.addr %s146, 128
          %s148 = scalar_lea.vmem [#allocation4], %s147
          %s149 = smul.u32 16, %s26
          %s151 = ssub.s32 2048, 2048
          %152 = vsyncadd %s145, %s151
          %s153 = sadd.s32 %s25, %s149
          %s154 = smul.addr %s24, 48
          %s155 = sadd.s32 %s153, %s154
          %s156 = smul.addr %s155, 128
          %s157 = scalar_lea.hbm %s0, %s156
          %s158 = sshll.u32 %s148, 4
          %s159 = int_to_ptr.vmem [resolvable:$true] %s158
          %164 = dma.hbm_to_vmem [thread:$0]  %s157, 2048, %s159, %s145, 128, 128, 8
        $region20: #{tpu_custom_call.1} parent=15 // pred_fallthru
          _
        // Predicated region
        $region21: #{tpu_custom_call.1} parent=15 // pred_check
          %p165 = pneg %p88
        $region22: #{tpu_custom_call.1} parent=15 // pred_check_branch
          %167 = sbr.rel (%p165) target = $region24
        $region23: #{tpu_custom_call.1} parent=15 // pred_region
          %s168 = sand.u32 %s78, 1
          %s169 = scalar_lea.sflag [#allocation8], %s168
          %s170 = sand.u32 %s78, 1
          %s171 = scalar_lea.vmem [#allocation7], %s170
          %s173 = ssub.s32 16, 16
          %174 = vsyncadd %s169, %s173
          %s175 = smul.addr %s24, 3
          %s176 = sadd.s32 %s26, %s175
          %s177 = smul.addr %s176, 16
          %s178 = scalar_lea.hbm %s1, %s177
          %s180 = sshll.u32 %s171, 4
          %s181 = int_to_ptr.vmem [resolvable:$true] %s180
          %183 = dma.hbm_to_vmem [thread:$0]  %s178, 16, %s181, %s169
        $region24: #{tpu_custom_call.1} parent=15 // pred_fallthru
          _
      $region16: #{tpu_custom_call.1} parent=5 // pred_fallthru
        _
      %p184 = scmp.le.s32.totalorder 1, %s17
      %p185 = scmp.lt.s32.totalorder %s17, 7
      %p186 = pnand %p184, %p185
      %p187 = pneg %p186
      // Predicated region
      $region25: #{tpu_custom_call.1} parent=5 // pred_check
        _
      $region26: #{tpu_custom_call.1} parent=5 // pred_check_branch
        %189 = sbr.rel (%p186) target = $region28
      $region27: #{tpu_custom_call.1} parent=5 // pred_region
        %s190 = ssub.s32 %s17, 1
        %s191 = sand.u32 %s53, 1
        %s192 = scalar_lea.sflag [#allocation5], %s191
        %s193 = sand.u32 %s53, 1
        %s194 = smul.addr %s193, 128
        %s195 = scalar_lea.vmem [#allocation4], %s194
        // Predicated region
        $region29: #{tpu_custom_call.1} parent=27 // pred_check
          %p196 = pneg %p66
        $region30: #{tpu_custom_call.1} parent=27 // pred_check_branch
          %198 = sbr.rel (%p196) target = $region32
        $region31: #{tpu_custom_call.1} parent=27 // pred_region
          %199 = dma.done %s192, 2048
        $region32: #{tpu_custom_call.1} parent=27 // pred_fallthru
          _
        %s200 = sand.u32 %s81, 1
        %s201 = scalar_lea.sflag [#allocation8], %s200
        %s202 = sand.u32 %s81, 1
        %s203 = scalar_lea.vmem [#allocation7], %s202
        // Predicated region
        $region33: #{tpu_custom_call.1} parent=27 // pred_check
          %p204 = pneg %p94
        $region34: #{tpu_custom_call.1} parent=27 // pred_check_branch
          %206 = sbr.rel (%p204) target = $region36
        $region35: #{tpu_custom_call.1} parent=27 // pred_region
          %207 = dma.done %s201, 16
        $region36: #{tpu_custom_call.1} parent=27 // pred_fallthru
          _
        %s208 = sand.u32 %s53, 1
        %s209 = scalar_lea.sflag [#allocation5], %s208
        %s210 = sand.u32 %s53, 1
        %s211 = smul.addr %s210, 128
        %s212 = scalar_lea.vmem [#allocation4], %s211
        %p213 = pneg %p66
        %p214 = pneg %p63
        %s215 = sand.u32 %s81, 1
        %s216 = scalar_lea.sflag [#allocation8], %s215
        %s217 = sand.u32 %s81, 1
        %s218 = scalar_lea.vmem [#allocation7], %s217
        %p219 = pneg %p94
        %p220 = pneg %p91
        %p221 = pneg %p122
        %p222 = pneg %p119
        %s223 = sand.u32 %s109, 1
        %s224 = scalar_lea.sflag [#allocation6], %s223
        %s225 = sand.u32 %s109, 1
        %s226 = scalar_lea.vmem [#allocation9], %s225
        %s227 = smul.u32 16, %s29
        %p228 = scmp.eq.s32.totalorder %s29, 0
        // Predicated region
        $region37: #{tpu_custom_call.1} parent=27 // pred_check
          %p229 = pneg %p228
        $region38: #{tpu_custom_call.1} parent=27 // pred_check_branch
          %231 = sbr.rel (%p229) target = $region40
        $region39: #{tpu_custom_call.1} parent=27 // pred_region
          %232 = vst [vmem:[#allocation2] sm:$0x1] 0.0
          %vm233 = vcmask 0
          %234 = vst.msk [vmem:[#allocation3] sm:$0x1] %vm233, 0.0
        $region40: #{tpu_custom_call.1} parent=27 // pred_fallthru
          _
        %v235 = vld [vmem:[%s195] sm:$0xff]
        %v236 = vld [vmem:[%s195 + $0x8] sm:$0xff]
        %v237 = vld [vmem:[%s195 + $0x10] sm:$0xff]
        %v238 = vld [vmem:[%s195 + $0x18] sm:$0xff]
        %v239 = vld [vmem:[%s195 + $0x20] sm:$0xff]
        %v240 = vld [vmem:[%s195 + $0x28] sm:$0xff]
        %v241 = vld [vmem:[%s195 + $0x30] sm:$0xff]
        %v242 = vld [vmem:[%s195 + $0x38] sm:$0xff]
        %v243 = vld [vmem:[%s195 + $0x40] sm:$0xff]
        %v244 = vld [vmem:[%s195 + $0x48] sm:$0xff]
        %v245 = vld [vmem:[%s195 + $0x50] sm:$0xff]
        %v246 = vld [vmem:[%s195 + $0x58] sm:$0xff]
        %v247 = vld [vmem:[%s195 + $0x60] sm:$0xff]
        %v248 = vld [vmem:[%s195 + $0x68] sm:$0xff]
        %v249 = vld [vmem:[%s195 + $0x70] sm:$0xff]
        %v250 = vld [vmem:[%s195 + $0x78] sm:$0xff]
        %v251 = vld [vmem:[%s203] sm:$0x1]
        %v252 = vld [vmem:[#allocation2] sm:$0x1]
        %253 = vmatprep.subr.mxu0 0.0
        %254 = vmatpush1.msra.mxu0 %v235
        %255 = vmatprep.subr.mxu0 0.0
        %256 = vmatpush1.msra.mxu0 %v236
        %257 = vmatprep.subr.mxu0 0.0
        %258 = vmatpush1.msra.mxu0 %v237
        %259 = vmatprep.subr.mxu0 0.0
        %260 = vmatpush1.msra.mxu0 %v238
        %261 = vmatprep.subr.mxu0 0.0
        %262 = vmatpush1.msra.mxu0 %v239
        %263 = vmatprep.subr.mxu0 0.0
        %264 = vmatpush1.msra.mxu0 %v240
        %265 = vmatprep.subr.mxu0 0.0
        %266 = vmatpush1.msra.mxu0 %v241
        %267 = vmatprep.subr.mxu0 0.0
        %268 = vmatpush1.msra.mxu0 %v242
        %269 = vmatprep.subr.mxu0 0.0
        %270 = vmatpush1.msra.mxu0 %v243
        %271 = vmatprep.subr.mxu0 0.0
        %272 = vmatpush1.msra.mxu0 %v244
        %273 = vmatprep.subr.mxu0 0.0
        %274 = vmatpush1.msra.mxu0 %v245
        %275 = vmatprep.subr.mxu0 0.0
        %276 = vmatpush1.msra.mxu0 %v246
        %277 = vmatprep.subr.mxu0 0.0
        %278 = vmatpush1.msra.mxu0 %v247
        %279 = vmatprep.subr.mxu0 0.0
        %280 = vmatpush1.msra.mxu0 %v248
        %281 = vmatprep.subr.mxu0 0.0
        %282 = vmatpush1.msra.mxu0 %v249
        %283 = vmatprep.subr.mxu0 0.0
        %284 = vmatpush1.msra.mxu0 %v250
        %285 = vmatprep.subr.mxu0 0.0
        %286 = vmatpush1.msra.mxu0 0.0
        %287 = vmatprep.subr.mxu0 0.0
        %288 = vmatpush1.msra.mxu0 0.0
        %289 = vmatprep.subr.mxu0 0.0
        %290 = vmatpush1.msra.mxu0 0.0
        %291 = vmatprep.subr.mxu0 0.0
        %292 = vmatpush1.msra.mxu0 0.0
        %293 = vmatprep.subr.mxu0 0.0
        %294 = vmatpush1.msra.mxu0 0.0
        %295 = vmatprep.subr.mxu0 0.0
        %296 = vmatpush1.msra.mxu0 0.0
        %297 = vmatprep.subr.mxu0 0.0
        %298 = vmatpush1.msra.mxu0 0.0
        %299 = vmatprep.subr.mxu0 0.0
        %300 = vmatpush1.msra.mxu0 0.0
        %301 = vmatprep.subr.mxu0 0.0
        %302 = vmatpush1.msra.mxu0 0.0
        %303 = vmatprep.subr.mxu0 0.0
        %304 = vmatpush1.msra.mxu0 0.0
        %305 = vmatprep.subr.mxu0 0.0
        %306 = vmatpush1.msra.mxu0 0.0
        %307 = vmatprep.subr.mxu0 0.0
        %308 = vmatpush1.msra.mxu0 0.0
        %309 = vmatprep.subr.mxu0 0.0
        %310 = vmatpush1.msra.mxu0 0.0
        %311 = vmatprep.subr.mxu0 0.0
        %312 = vmatpush1.msra.mxu0 0.0
        %313 = vmatprep.subr.mxu0 0.0
        %314 = vmatpush1.msra.mxu0 0.0
        %315 = vmatprep.subr.mxu0 0.0
        %316 = vmatpush1.msra.mxu0 0.0
        %317 = vmatprep.mubr.f32.mxu0 0.0
        %318 = vmatmul.mubr.f32.gmra.mrb[0].mxu0 %v251
        %v319 = vpop.f32.mrb[0].mxu0
        %v320 = vadd.f32 0.0, %v319
        %v321 = vpop.f32.mrb[0].mxu0
        %322 = vdwg.mxu0
        %v323 = vadd.f32 %v252, %v320
        %324 = vst [vmem:[#allocation2] sm:$0x1] %v323
        %v325 = vld [vmem:[#allocation3] sm:$0x1]
        %vm326 = vcmask 1040384
        %v327 = vsel %vm326, %v251, 0.0
        %328 = vadd.xlane.f32.xlu0 %v327
        %v329 = vpop.xlane.xlu0 %328
        %v330 = vrot.slane %v329, 4
        %v331 = vadd.f32 %v329, %v330
        %v332 = vrot.slane %v331, 2
        %v333 = vadd.f32 %v331, %v332
        %v334 = vrot.slane %v333, 1
        %v335 = vadd.f32 %v333, %v334
        %s336 = vtos %v335
        %v337 = vstv %s336
        %v338 = vadd.f32 %v325, %v337
        %vm339 = vcmask 0
        %340 = vst.msk [vmem:[#allocation3] sm:$0x1] %vm339, %v338
        %p341 = scmp.eq.s32.totalorder %s29, 2
        // Predicated region
        $region41: #{tpu_custom_call.1} parent=27 // pred_check
          %p342 = pneg %p341
        $region42: #{tpu_custom_call.1} parent=27 // pred_check_branch
          %344 = sbr.rel (%p342) target = $region44
        $region43: #{tpu_custom_call.1} parent=27 // pred_region
          %v345 = vld [vmem:[#allocation3] sm:$0x1]
          %v346 = vmax.f32 %v345, 1e-09
          %v347 = vld [vmem:[#allocation2] sm:$0x1]
          %349 = vset.pattern.permute.xlu0 0
          %350 = vperm.xlu0 %349, %v346
          %v351 = vpop.permute.xlu0 %350
          %v353 = vlaneseq
          %v354 = vshrl.u32 %v353, 7
          %v355 = vsub.s32 0, %v354
          %v356 = vrot.slane %v351, %v355
          %v357 = vrcp.pop %v356
          %v358 = vmul.f32 %v347, %v357
          %359 = vst [vmem:[%s226] sm:$0x1] %v358
        $region44: #{tpu_custom_call.1} parent=27 // pred_fallthru
          _
        %s360 = sand.u32 %s109, 1
        %s361 = scalar_lea.sflag [#allocation6], %s360
        %s362 = sand.u32 %s109, 1
        %s363 = scalar_lea.vmem [#allocation9], %s362
        // Predicated region
        $region45: #{tpu_custom_call.1} parent=27 // pred_check
          %p364 = pneg %p119
        $region46: #{tpu_custom_call.1} parent=27 // pred_check_branch
          %366 = sbr.rel (%p364) target = $region48
        $region47: #{tpu_custom_call.1} parent=27 // pred_region
          %s368 = ssub.s32 16, 16
          %369 = vsyncadd %s361, %s368
          %s370 = sadd.s32 %s28, %s27
          %s371 = smul.addr %s370, 16
          %s372 = scalar_lea.hbm %s2, %s371
          %s374 = sshll.u32 %s363, 4
          %s375 = int_to_ptr.vmem [resolvable:$true] %s374
          %377 = dma.vmem_to_hbm [thread:$0]  %s375, 16, %s372, %s361
        $region48: #{tpu_custom_call.1} parent=27 // pred_fallthru
          _
      $region28: #{tpu_custom_call.1} parent=5 // pred_fallthru
        _
      %p378 = scmp.le.s32.totalorder 2, %s17
      // Predicated region
      $region49: #{tpu_custom_call.1} parent=5 // pred_check
        %p379 = pneg %p378
      $region50: #{tpu_custom_call.1} parent=5 // pred_check_branch
        %381 = sbr.rel (%p379) target = $region52
      $region51: #{tpu_custom_call.1} parent=5 // pred_region
        %s382 = ssub.s32 %s17, 2
        // Predicated region
        $region53: #{tpu_custom_call.1} parent=51 // pred_check
          %p383 = pneg %p125
        $region54: #{tpu_custom_call.1} parent=51 // pred_check_branch
          %385 = sbr.rel (%p383) target = $region56
        $region55: #{tpu_custom_call.1} parent=51 // pred_region
          %s386 = sand.u32 %s110, 1
          %s387 = scalar_lea.sflag [#allocation6], %s386
          %s388 = sand.u32 %s110, 1
          %s389 = scalar_lea.vmem [#allocation9], %s388
          %390 = dma.done %s387, 16
        $region56: #{tpu_custom_call.1} parent=51 // pred_fallthru
          _
      $region52: #{tpu_custom_call.1} parent=5 // pred_fallthru
        _
    $region6: #{tpu_custom_call.1} parent=1 // loop_footer
      %s21 = sadd.s32 1, %s17
    $region7: #{tpu_custom_call.1} parent=1 // loop_footer_branch
      %16 = sbr.rel target = $region3
    $region8: #{tpu_custom_call.1} parent=1 // loop_exit
      _
    %391 = vsyncpa [#allocation5], 1
    %s392 = scalar_lea.sflag [#allocation5], 1
    %393 = vsyncpa %s392, 1
    %394 = vsyncpa [#allocation8], 1
    %s395 = scalar_lea.sflag [#allocation8], 1
    %396 = vsyncpa %s395, 1
    %397 = vsyncpa [#allocation6], 1
    %s398 = scalar_lea.sflag [#allocation6], 1
    %399 = vsyncpa %s398, 1

</llo_original>
